<compile_context>
chip_gen: v7x
topology: tpu7x:2x2x1
jax: 0.10.0
libtpu: 0.0.40
codegen_flags: <defaults>
</compile_context>

<pallas_src>
import functools

import jax
import jax.numpy as jnp
from jax.experimental import pallas as pl
from jax.experimental.pallas import tpu as pltpu

EPS = 1e-9
TEMP = 0.66  # concrete-distribution temperature (sampling is host-side glue)


def _decoder_b_kernel(a_dim, w_pack, bf16_matmul, z_ref, attr_ref,
                      w1_ref, b1_ref, w2_ref, b2_ref, out_ref):
    """One batch tile; both modalities lane-stacked through block-diag weights."""
    z = z_ref[...]          # (tb, 2A) concrete latents, values in (0, 1)
    t = attr_ref[...]       # (tb, A)  0/1 float targets

    # modality 1 ('poe'): (z + EPS) ** (1/3) == exp(log(z + EPS) / 3), z + EPS > 0
    z_poe = jnp.exp(jnp.log(z + EPS) * (1.0 / 3.0))
    z_lane = jnp.concatenate([z, z_poe], axis=-1)        # (tb, 4A) lane-stacked

    mm_dtype = jnp.bfloat16 if bf16_matmul else jnp.float32

    # dec_hidden (block-diagonal over both modalities): Linear + ReLU
    h = jnp.dot(z_lane.astype(mm_dtype), w1_ref[...].astype(mm_dtype),
                preferred_element_type=jnp.float32) + b1_ref[...]
    h = jnp.maximum(h, 0.0)                              # (tb, 2H)

    # dec_label: Linear, then F.logsigmoid(logits + EPS) (stable form)
    x = jnp.dot(h.astype(mm_dtype), w2_ref[...].astype(mm_dtype),
                preferred_element_type=jnp.float32) + b2_ref[...] + EPS  # (tb, 2A)

    u = jnp.exp(-jnp.abs(x))                             # shared transcendental
    logp = jnp.minimum(x, 0.0) - jnp.log1p(u)            # logsigmoid(x), <= 0
    # sigmoid(x) = exp(logp), rebuilt from u with a cheap approximate reciprocal
    e = jnp.where(x >= 0.0, 1.0, u) * pl.reciprocal(1.0 + u, approx=True)

    # BCE-with-logits(y=logp, target=t), per element; since logp <= 0:
    #   max(y,0) - y*t + log1p(exp(-|y|)) == log1p(e) - logp * t
    t2 = jnp.concatenate([t, t], axis=-1)                # targets dup'd per modality
    per = jnp.log1p(e) - logp * t2
    loss0 = jnp.sum(per[:, :a_dim], axis=1, keepdims=True)
    loss1 = jnp.sum(per[:, a_dim:], axis=1, keepdims=True)

    # prediction round(sigmoid(x)) == (x > 0); float equality is exact (both 0/1)
    pred = jnp.where(x > 0.0, 1.0, 0.0)
    hit = (pred == t2).astype(jnp.float32)
    corr0 = jnp.sum(hit[:, :a_dim], axis=1, keepdims=True)
    corr1 = jnp.sum(hit[:, a_dim:], axis=1, keepdims=True)

    parts = [logp, loss0, loss1, corr0, corr1]
    pad_w = w_pack - 2 * a_dim - 4
    if pad_w > 0:
        parts.append(jnp.zeros((logp.shape[0], pad_w), jnp.float32))
    # single unmasked, lane-dense, full-width store
    out_ref[...] = jnp.concatenate(parts, axis=-1)


@functools.partial(jax.jit, static_argnames=("batch_tile", "bf16_matmul"))
def decoder_b_forward(latents, attributes, params, *, batch_tile=1024,
                      bf16_matmul=False):
    """Fused forward for both modalities in a single pallas_call.

    Returns:
      logp : [2, B, A]   (modality 0 = plain latents, 1 = 'poe' latents)
      loss : [2, B]      per-sample BCE-with-logits loss summed over attrs
      acc  : [2]         (pred == attributes).sum() / A   (module's quirk: /A only)
    """
    B, two_a = latents.shape
    a_dim = attributes.shape[1]
    hidden = params["w1"].shape[1]
    w_pack = ((2 * a_dim + 4 + 127) // 128) * 128  # lane-dense packed width

    # block-diagonal weights: one matmul pair covers both modalities
    def blkdiag(w):
        zpad = jnp.zeros_like(w)
        return jnp.concatenate(
            [jnp.concatenate([w, zpad], axis=1),
             jnp.concatenate([zpad, w], axis=1)], axis=0)

    w1 = blkdiag(params["w1"])                        # (4A, 2H)
    b1 = jnp.concatenate([params["b1"]] * 2, axis=1)  # (1, 2H)
    w2 = blkdiag(params["w2"])                        # (2H, 2A)
    b2 = jnp.concatenate([params["b2"]] * 2, axis=1)  # (1, 2A)

    # batch tiling: largest multiple-of-8 tile <= batch_tile; Pallas masks the
    # ragged final block; >= 2 grid steps when possible so v7x's two TCs share.
    if B > batch_tile:
        tb = max(8, (batch_tile // 8) * 8)
    elif B >= 16:
        tb = ((B + 15) // 16) * 8     # ~ceil(B/2) rounded up to a multiple of 8
    else:
        tb = B
    n_b = pl.cdiv(B, tb)

    kernel = functools.partial(_decoder_b_kernel, a_dim, w_pack, bf16_matmul)

    cost = pl.CostEstimate(
        flops=2 * B * (4 * a_dim * 2 * hidden + 2 * hidden * 2 * a_dim),
        transcendentals=6 * B * 2 * a_dim,
        bytes_accessed=4 * (B * (3 * a_dim + w_pack)
                            + w1.size + b1.size + w2.size + b2.size))

    packed = pl.pallas_call(
        kernel,
        grid=(n_b,),
        in_specs=[
            pl.BlockSpec((tb, two_a), lambda b: (b, 0)),    # latents
            pl.BlockSpec((tb, a_dim), lambda b: (b, 0)),    # attributes
            pl.BlockSpec(w1.shape, lambda b: (0, 0)),       # weights stay resident
            pl.BlockSpec(b1.shape, lambda b: (0, 0)),
            pl.BlockSpec(w2.shape, lambda b: (0, 0)),
            pl.BlockSpec(b2.shape, lambda b: (0, 0)),
        ],
        out_specs=pl.BlockSpec((tb, w_pack), lambda b: (b, 0)),
        out_shape=jax.ShapeDtypeStruct((B, w_pack), jnp.float32),
        compiler_params=pltpu.CompilerParams(
            dimension_semantics=("parallel",)),
        cost_estimate=cost,
    )(latents, attributes, w1, b1, w2, b2)

    logp = jnp.stack([packed[:, :a_dim], packed[:, a_dim:2 * a_dim]], axis=0)
    loss = packed[:, 2 * a_dim:2 * a_dim + 2].T                         # [2, B]
    acc = packed[:, 2 * a_dim + 2:2 * a_dim + 4].sum(axis=0) / a_dim    # [2]
    return logp, loss, acc


def _kaiming_params(key, in1, hidden, out):
    # deterministic kaiming-normal-style init for the two Linear layers
    k1, k2 = jax.random.split(key)
    w1 = jax.random.normal(k1, (in1, hidden), jnp.float32) * jnp.sqrt(2.0 / in1)
    b1 = jnp.zeros((1, hidden), jnp.float32)
    w2 = jax.random.normal(k2, (hidden, out), jnp.float32) * jnp.sqrt(2.0 / hidden)
    b2 = jnp.zeros((1, out), jnp.float32)
    return {"w1": w1, "b1": b1, "w2": w2, "b2": b2}


def _reference(latents, attributes, params, poe):
    """Plain-JAX reference with the module's original (unsimplified) formulas."""
    z = jnp.exp(jnp.log(latents + EPS) / 3.0) if poe else latents
    h = jnp.maximum(z @ params["w1"] + params["b1"], 0.0)
    x = h @ params["w2"] + params["b2"] + EPS
    logp = jnp.minimum(x, 0.0) - jnp.log1p(jnp.exp(-jnp.abs(x)))
    t = attributes
    per = jnp.maximum(logp, 0.0) - logp * t + jnp.log1p(jnp.exp(-jnp.abs(logp)))
    loss = per.sum(axis=1)
    acc = (jnp.round(jnp.exp(logp)) == t).astype(jnp.float32).sum() / t.shape[1]
    return logp, loss, acc


if __name__ == "__main__":
    key = jax.random.PRNGKey(0)
    k_par, k_lat, k_attr = jax.random.split(key, 3)

    # zSharedAttr_dim = [2]*8 -> A = 16 attributes, each a 2-dim concrete
    zSharedAttr_dim = [2] * 8
    A = sum(zSharedAttr_dim)  # 16
    num_hidden = 32
    B = 8

    params = _kaiming_params(k_par, 2 * A, num_hidden, A)

    # concatenated concrete samples (values in (0,1)), like cat(latents, -1)
    latents = jax.random.uniform(k_lat, (B, 2 * A), jnp.float32, 1e-3, 1.0 - 1e-3)
    attributes = jax.random.bernoulli(k_attr, 0.5, (B, A)).astype(jnp.float32)

    # single fused call handles both shared modalities ('crossA' and 'poe')
    logp, loss, acc = decoder_b_forward(latents, attributes, params)
    jax.block_until_ready((logp, loss, acc))

    # probtorch-trace-style bookkeeping (host side)
    p_trace = {
        "attr_crossA": (logp[0], loss[0]),
        "attr_poe": (logp[1], loss[1]),
    }

    # verify both modalities against the plain-JAX reference
    for m, poe in enumerate([False, True]):
        r_logp, r_loss, r_acc = _reference(latents, attributes, params, poe)
        assert jnp.allclose(logp[m], r_logp, atol=1e-4, rtol=1e-4), "logp mismatch"
        # loss path uses pl.reciprocal(approx=True) for sigmoid -> slightly looser
        assert jnp.allclose(loss[m], r_loss, atol=1e-2, rtol=1e-3), "loss mismatch"
        assert jnp.allclose(acc[m], r_acc, atol=1e-5), "acc mismatch"

    print("KERNEL_OK")
</pallas_src>

<mosaic_0001>
module attributes {stable_mosaic.version = 11 : i64} {
  func.func @_decoder_b_kernel(%arg0: i32, %arg1: memref<8x32xf32, #tpu.memory_space<vmem>>, %arg2: memref<8x16xf32, #tpu.memory_space<vmem>>, %arg3: memref<64x64xf32, #tpu.memory_space<vmem>>, %arg4: memref<1x64xf32, #tpu.memory_space<vmem>>, %arg5: memref<64x32xf32, #tpu.memory_space<vmem>>, %arg6: memref<1x32xf32, #tpu.memory_space<vmem>>, %arg7: memref<8x128xf32, #tpu.memory_space<vmem>>) attributes {dimension_semantics = [#tpu.dimension_semantics<parallel>], iteration_bounds = array<i64: 1>, scalar_prefetch = 0 : i64, scratch_operands = 0 : i64, tpu.core_type = #tpu.core_type<tc>, window_params = [{transform_indices = @transform_0, window_bounds = array<i64: 8, 32>}, {transform_indices = @transform_1, window_bounds = array<i64: 8, 16>}, {pipeline_mode = #tpu.pipeline_mode<synchronous>, transform_indices = @transform_2, window_bounds = array<i64: 64, 64>}, {pipeline_mode = #tpu.pipeline_mode<synchronous>, transform_indices = @transform_3, window_bounds = array<i64: 1, 64>}, {pipeline_mode = #tpu.pipeline_mode<synchronous>, transform_indices = @transform_4, window_bounds = array<i64: 64, 32>}, {pipeline_mode = #tpu.pipeline_mode<synchronous>, transform_indices = @transform_5, window_bounds = array<i64: 1, 32>}, {transform_indices = @transform_6, window_bounds = array<i64: 8, 128>}]} {
    %c0 = arith.constant 0 : index
    %c0_0 = arith.constant 0 : index
    %0 = vector.load %arg1[%c0, %c0_0] : memref<8x32xf32, #tpu.memory_space<vmem>>, vector<8x32xf32>
    %c0_1 = arith.constant 0 : index
    %c0_2 = arith.constant 0 : index
    %1 = vector.load %arg2[%c0_1, %c0_2] : memref<8x16xf32, #tpu.memory_space<vmem>>, vector<8x16xf32>
    %cst = arith.constant 9.99999971E-10 : f32
    %2 = vector.broadcast %cst : f32 to vector<8x32xf32>
    %3 = arith.addf %0, %2 : vector<8x32xf32>
    %4 = math.log %3 : vector<8x32xf32>
    %cst_3 = arith.constant 0.333333343 : f32
    %5 = vector.broadcast %cst_3 : f32 to vector<8x32xf32>
    %6 = arith.mulf %4, %5 : vector<8x32xf32>
    %7 = math.exp %6 : vector<8x32xf32>
    %8 = tpu.concatenate %0, %7 in 1 : vector<8x32xf32>, vector<8x32xf32> -> vector<8x64xf32>
    %c0_4 = arith.constant 0 : index
    %c0_5 = arith.constant 0 : index
    %9 = vector.load %arg3[%c0_4, %c0_5] : memref<64x64xf32, #tpu.memory_space<vmem>>, vector<64x64xf32>
    %cst_6 = arith.constant dense<0.000000e+00> : vector<8x64xf32>
    %10 = tpu.matmul %8, %9, %cst_6 {dimension_numbers = #tpu.dot_dimension_numbers<[1], [0], [0], [1], [0, 0, 1, 1], [], []>} : vector<8x64xf32>, vector<64x64xf32>, vector<8x64xf32> -> vector<8x64xf32>
    %c0_7 = arith.constant 0 : index
    %c0_8 = arith.constant 0 : index
    %11 = vector.load %arg4[%c0_7, %c0_8] : memref<1x64xf32, #tpu.memory_space<vmem>>, vector<1x64xf32>
    %12 = vector.broadcast %11 : vector<1x64xf32> to vector<8x64xf32>
    %13 = arith.addf %10, %12 : vector<8x64xf32>
    %cst_9 = arith.constant 0.000000e+00 : f32
    %14 = vector.broadcast %cst_9 : f32 to vector<8x64xf32>
    %15 = arith.maximumf %13, %14 : vector<8x64xf32>
    %c0_10 = arith.constant 0 : index
    %c0_11 = arith.constant 0 : index
    %16 = vector.load %arg5[%c0_10, %c0_11] : memref<64x32xf32, #tpu.memory_space<vmem>>, vector<64x32xf32>
    %cst_12 = arith.constant dense<0.000000e+00> : vector<8x32xf32>
    %17 = tpu.matmul %15, %16, %cst_12 {dimension_numbers = #tpu.dot_dimension_numbers<[1], [0], [0], [1], [0, 0, 1, 1], [], []>} : vector<8x64xf32>, vector<64x32xf32>, vector<8x32xf32> -> vector<8x32xf32>
    %c0_13 = arith.constant 0 : index
    %c0_14 = arith.constant 0 : index
    %18 = vector.load %arg6[%c0_13, %c0_14] : memref<1x32xf32, #tpu.memory_space<vmem>>, vector<1x32xf32>
    %19 = vector.broadcast %18 : vector<1x32xf32> to vector<8x32xf32>
    %20 = arith.addf %17, %19 : vector<8x32xf32>
    %cst_15 = arith.constant 9.99999971E-10 : f32
    %21 = vector.broadcast %cst_15 : f32 to vector<8x32xf32>
    %22 = arith.addf %20, %21 : vector<8x32xf32>
    %23 = math.absf %22 : vector<8x32xf32>
    %cst_16 = arith.constant 0.000000e+00 : f32
    %24 = vector.broadcast %cst_16 : f32 to vector<8x32xf32>
    %25 = arith.subf %24, %23 : vector<8x32xf32>
    %26 = math.exp %25 : vector<8x32xf32>
    %cst_17 = arith.constant 0.000000e+00 : f32
    %27 = vector.broadcast %cst_17 : f32 to vector<8x32xf32>
    %28 = arith.minimumf %22, %27 : vector<8x32xf32>
    %29 = math.log1p %26 : vector<8x32xf32>
    %30 = arith.subf %28, %29 : vector<8x32xf32>
    %cst_18 = arith.constant 0.000000e+00 : f32
    %31 = vector.broadcast %cst_18 : f32 to vector<8x32xf32>
    %32 = arith.cmpf oge, %22, %31 : vector<8x32xf32>
    %cst_19 = arith.constant 1.000000e+00 : f32
    %33 = vector.broadcast %cst_19 : f32 to vector<8x32xf32>
    %34 = arith.select %32, %33, %26 : vector<8x32xi1>, vector<8x32xf32>
    %cst_20 = arith.constant 1.000000e+00 : f32
    %35 = vector.broadcast %cst_20 : f32 to vector<8x32xf32>
    %36 = arith.addf %35, %26 : vector<8x32xf32>
    %37 = tpu.reciprocal %36 {approx = true} : vector<8x32xf32> -> vector<8x32xf32>
    %38 = arith.mulf %34, %37 : vector<8x32xf32>
    %39 = tpu.concatenate %1, %1 in 1 : vector<8x16xf32>, vector<8x16xf32> -> vector<8x32xf32>
    %40 = math.log1p %38 : vector<8x32xf32>
    %41 = arith.mulf %30, %39 : vector<8x32xf32>
    %42 = arith.subf %40, %41 : vector<8x32xf32>
    %43 = vector.extract_strided_slice %42 {offsets = [0, 0], sizes = [8, 16], strides = [1, 1]} : vector<8x32xf32> to vector<8x16xf32>
    %cst_21 = arith.constant dense<0.000000e+00> : vector<8xf32>
    %44 = vector.multi_reduction <add>, %43, %cst_21 [1] : vector<8x16xf32> to vector<8xf32>
    %45 = vector.shape_cast %44 : vector<8xf32> to vector<8x1xf32>
    %46 = vector.extract_strided_slice %42 {offsets = [0, 16], sizes = [8, 16], strides = [1, 1]} : vector<8x32xf32> to vector<8x16xf32>
    %cst_22 = arith.constant dense<0.000000e+00> : vector<8xf32>
    %47 = vector.multi_reduction <add>, %46, %cst_22 [1] : vector<8x16xf32> to vector<8xf32>
    %48 = vector.shape_cast %47 : vector<8xf32> to vector<8x1xf32>
    %cst_23 = arith.constant 0.000000e+00 : f32
    %49 = vector.broadcast %cst_23 : f32 to vector<8x32xf32>
    %50 = arith.cmpf ogt, %22, %49 : vector<8x32xf32>
    %cst_24 = arith.constant 1.000000e+00 : f32
    %cst_25 = arith.constant 0.000000e+00 : f32
    %51 = vector.broadcast %cst_24 : f32 to vector<8x32xf32>
    %52 = vector.broadcast %cst_25 : f32 to vector<8x32xf32>
    %53 = arith.select %50, %51, %52 : vector<8x32xi1>, vector<8x32xf32>
    %54 = arith.cmpf oeq, %53, %39 : vector<8x32xf32>
    %55 = arith.extui %54 : vector<8x32xi1> to vector<8x32xi32>
    %56 = arith.sitofp %55 : vector<8x32xi32> to vector<8x32xf32>
    %57 = vector.extract_strided_slice %56 {offsets = [0, 0], sizes = [8, 16], strides = [1, 1]} : vector<8x32xf32> to vector<8x16xf32>
    %cst_26 = arith.constant dense<0.000000e+00> : vector<8xf32>
    %58 = vector.multi_reduction <add>, %57, %cst_26 [1] : vector<8x16xf32> to vector<8xf32>
    %59 = vector.shape_cast %58 : vector<8xf32> to vector<8x1xf32>
    %60 = vector.extract_strided_slice %56 {offsets = [0, 16], sizes = [8, 16], strides = [1, 1]} : vector<8x32xf32> to vector<8x16xf32>
    %cst_27 = arith.constant dense<0.000000e+00> : vector<8xf32>
    %61 = vector.multi_reduction <add>, %60, %cst_27 [1] : vector<8x16xf32> to vector<8xf32>
    %62 = vector.shape_cast %61 : vector<8xf32> to vector<8x1xf32>
    %cst_28 = arith.constant 0.000000e+00 : f32
    %63 = vector.broadcast %cst_28 : f32 to vector<8x92xf32>
    %64 = tpu.concatenate %30, %45, %48, %59, %62, %63 in 1 : vector<8x32xf32>, vector<8x1xf32>, vector<8x1xf32>, vector<8x1xf32>, vector<8x1xf32>, vector<8x92xf32> -> vector<8x128xf32>
    %c0_29 = arith.constant 0 : index
    %c0_30 = arith.constant 0 : index
    %65 = vector.load %arg7[%c0_29, %c0_30] : memref<8x128xf32, #tpu.memory_space<vmem>>, vector<8x128xf32>
    tpu.vector_store %arg7[%c0_29, %c0_30], %64 {strides = array<i32>} : memref<8x128xf32, #tpu.memory_space<vmem>>, vector<8x128xf32>,
    return
  }
  func.func @transform_0(%arg0: i32) -> (i32, i32) {
    %c0_i32 = arith.constant 0 : i32
    %c0_i32_0 = arith.constant 0 : i32
    return %arg0, %c0_i32 : i32, i32
  }
  func.func @transform_1(%arg0: i32) -> (i32, i32) {
    %c0_i32 = arith.constant 0 : i32
    %c0_i32_0 = arith.constant 0 : i32
    return %arg0, %c0_i32 : i32, i32
  }
  func.func @transform_2(%arg0: i32) -> (i32, i32) {
    %c0_i32 = arith.constant 0 : i32
    %c0_i32_0 = arith.constant 0 : i32
    %c0_i32_1 = arith.constant 0 : i32
    return %c0_i32, %c0_i32_0 : i32, i32
  }
  func.func @transform_3(%arg0: i32) -> (i32, i32) {
    %c0_i32 = arith.constant 0 : i32
    %c0_i32_0 = arith.constant 0 : i32
    %c0_i32_1 = arith.constant 0 : i32
    return %c0_i32, %c0_i32_0 : i32, i32
  }
  func.func @transform_4(%arg0: i32) -> (i32, i32) {
    %c0_i32 = arith.constant 0 : i32
    %c0_i32_0 = arith.constant 0 : i32
    %c0_i32_1 = arith.constant 0 : i32
    return %c0_i32, %c0_i32_0 : i32, i32
  }
  func.func @transform_5(%arg0: i32) -> (i32, i32) {
    %c0_i32 = arith.constant 0 : i32
    %c0_i32_0 = arith.constant 0 : i32
    %c0_i32_1 = arith.constant 0 : i32
    return %c0_i32, %c0_i32_0 : i32, i32
  }
  func.func @transform_6(%arg0: i32) -> (i32, i32) {
    %c0_i32 = arith.constant 0 : i32
    %c0_i32_0 = arith.constant 0 : i32
    return %arg0, %c0_i32 : i32, i32
  }
}

</mosaic_0001>

<llo_original>
// kernel: decoder_b_forward.1
$region0: #{decoder_b_forward.1}
  #allocation0 [shape = 'u32[]', space=smem, size = 0x4, offset = 0x4, fixed_abs, tag = 'smem constant byte address 0x4 - core index']
  #allocation1 [shape = 'u32[144,128]{1,0:T(1,128)}', space=vmem, size = 0x12000, scoped, tag = 'internal scratch']
  %s0 = inlined_call_operand.vmem [shape: f32[8,32], index: 0, kind: input, shape index: {}]
  %s1 = inlined_call_operand.vmem [shape: f32[8,16], index: 1, kind: input, shape index: {}]
  %s2 = inlined_call_operand.vmem [shape: f32[64,64], index: 2, kind: input, shape index: {}]
  %s3 = inlined_call_operand.vmem [shape: f32[1,64], index: 3, kind: input, shape index: {}]
  %s4 = inlined_call_operand.vmem [shape: f32[64,32], index: 4, kind: input, shape index: {}]
  %s5 = inlined_call_operand.vmem [shape: f32[1,32], index: 5, kind: input, shape index: {}]
  %s6 = inlined_call_operand.vmem [shape: f32[8,128], index: 6, kind: output, shape index: {}]
  %s7 = sld [smem:[#allocation0]]
  $region34: #{decoder_b_forward.1} parent=0
    _
  %s9 = ssub.s32 1, %s7
  %s10 = scalar_select 0, %s9, %s7
  // Predicated region
  $region2: #{decoder_b_forward.1} parent=0 // pred_check
    _
  $region3: #{decoder_b_forward.1} parent=0 // pred_check_branch
    %12 = sbr.rel (0) target = $region5
  $region4: #{decoder_b_forward.1} parent=0 // pred_region
    _
  $region5: #{decoder_b_forward.1} parent=0 // pred_fallthru
    _
  // Predicated region
  $region6: #{decoder_b_forward.1} parent=0 // pred_check
    _
  $region7: #{decoder_b_forward.1} parent=0 // pred_check_branch
    %14 = sbr.rel (0) target = $region9
  $region8: #{decoder_b_forward.1} parent=0 // pred_region
    _
  $region9: #{decoder_b_forward.1} parent=0 // pred_fallthru
    _
  // Predicated region
  $region10: #{decoder_b_forward.1} parent=0 // pred_check
    _
  $region11: #{decoder_b_forward.1} parent=0 // pred_check_branch
    %16 = sbr.rel (0) target = $region13
  $region12: #{decoder_b_forward.1} parent=0 // pred_region
    _
  $region13: #{decoder_b_forward.1} parent=0 // pred_fallthru
    _
  // Predicated region
  $region14: #{decoder_b_forward.1} parent=0 // pred_check
    _
  $region15: #{decoder_b_forward.1} parent=0 // pred_check_branch
    %18 = sbr.rel (0) target = $region17
  $region16: #{decoder_b_forward.1} parent=0 // pred_region
    _
  $region17: #{decoder_b_forward.1} parent=0 // pred_fallthru
    _
  // Predicated region
  $region18: #{decoder_b_forward.1} parent=0 // pred_check
    _
  $region19: #{decoder_b_forward.1} parent=0 // pred_check_branch
    %20 = sbr.rel (0) target = $region21
  $region20: #{decoder_b_forward.1} parent=0 // pred_region
    _
  $region21: #{decoder_b_forward.1} parent=0 // pred_fallthru
    _
  // Predicated region
  $region22: #{decoder_b_forward.1} parent=0 // pred_check
    _
  $region23: #{decoder_b_forward.1} parent=0 // pred_check_branch
    %22 = sbr.rel (0) target = $region25
  $region24: #{decoder_b_forward.1} parent=0 // pred_region
    _
  $region25: #{decoder_b_forward.1} parent=0 // pred_fallthru
    _
  %v23 = vld [vmem:[%s0] sm:$0xff]
  %v24 = vld [vmem:[%s1] sm:$0xff]
  %v25 = vadd.f32 %v23, 1e-09
  %v26 = vlog2.pop %v25
  %v27 = vmul.f32 %v26, 0.6931472
  %v28 = vmul.f32 %v27, 0.33333334
  %v29 = vmul.f32 %v28, 1.442695
  %v30 = vpow.pop %v29
  %32 = vrot.lane.b32.xlu0 %v30, 32
  %v33 = vpop.permute.xlu0 %32
  %vm35 = vcmask 261120
  %v36 = vsel %vm35, %v23, %v33
  %v37 = vld [vmem:[%s2] sm:$0xff]
  %v38 = vld [vmem:[%s2 + $0x8] sm:$0xff]
  %v39 = vld [vmem:[%s2 + $0x10] sm:$0xff]
  %v40 = vld [vmem:[%s2 + $0x18] sm:$0xff]
  %v41 = vld [vmem:[%s2 + $0x20] sm:$0xff]
  %v42 = vld [vmem:[%s2 + $0x28] sm:$0xff]
  %v43 = vld [vmem:[%s2 + $0x30] sm:$0xff]
  %v44 = vld [vmem:[%s2 + $0x38] sm:$0xff]
  %v45 = vld [vmem:[%s3] sm:$0x1]
  %v47 = vlaneseq
  %v48 = vshrl.u32 %v47, 7
  %v49 = vsub.s32 0, %v48
  %v50 = vrot.slane %v45, %v49
  %vm52 = vcmask 523264
  %v54 = vsel %vm52, %v36, 0
  %56 = vmatprep.subr.mxu0 0.0
  %57 = vmatpush1.msra.mxu0 %v37
  %58 = vmatprep.subr.mxu0 0.0
  %59 = vmatpush1.msra.mxu0 %v38
  %60 = vmatprep.subr.mxu0 0.0
  %61 = vmatpush1.msra.mxu0 %v39
  %62 = vmatprep.subr.mxu0 0.0
  %63 = vmatpush1.msra.mxu0 %v40
  %64 = vmatprep.subr.mxu0 0.0
  %65 = vmatpush1.msra.mxu0 %v41
  %66 = vmatprep.subr.mxu0 0.0
  %67 = vmatpush1.msra.mxu0 %v42
  %68 = vmatprep.subr.mxu0 0.0
  %69 = vmatpush1.msra.mxu0 %v43
  %70 = vmatprep.subr.mxu0 0.0
  %71 = vmatpush1.msra.mxu0 %v44
  %72 = vmatprep.subr.mxu0 0.0
  %73 = vmatpush1.msra.mxu0 0.0
  %74 = vmatprep.subr.mxu0 0.0
  %75 = vmatpush1.msra.mxu0 0.0
  %76 = vmatprep.subr.mxu0 0.0
  %77 = vmatpush1.msra.mxu0 0.0
  %78 = vmatprep.subr.mxu0 0.0
  %79 = vmatpush1.msra.mxu0 0.0
  %80 = vmatprep.subr.mxu0 0.0
  %81 = vmatpush1.msra.mxu0 0.0
  %82 = vmatprep.subr.mxu0 0.0
  %83 = vmatpush1.msra.mxu0 0.0
  %84 = vmatprep.subr.mxu0 0.0
  %85 = vmatpush1.msra.mxu0 0.0
  %86 = vmatprep.subr.mxu0 0.0
  %87 = vmatpush1.msra.mxu0 0.0
  %88 = vmatprep.subr.mxu0 0.0
  %89 = vmatpush1.msra.mxu0 0.0
  %90 = vmatprep.subr.mxu0 0.0
  %91 = vmatpush1.msra.mxu0 0.0
  %92 = vmatprep.subr.mxu0 0.0
  %93 = vmatpush1.msra.mxu0 0.0
  %94 = vmatprep.subr.mxu0 0.0
  %95 = vmatpush1.msra.mxu0 0.0
  %96 = vmatprep.subr.mxu0 0.0
  %97 = vmatpush1.msra.mxu0 0.0
  %98 = vmatprep.subr.mxu0 0.0
  %99 = vmatpush1.msra.mxu0 0.0
  %100 = vmatprep.subr.mxu0 0.0
  %101 = vmatpush1.msra.mxu0 0.0
  %102 = vmatprep.subr.mxu0 0.0
  %103 = vmatpush1.msra.mxu0 0.0
  %104 = vmatprep.subr.mxu0 0.0
  %105 = vmatpush1.msra.mxu0 0.0
  %106 = vmatprep.subr.mxu0 0.0
  %107 = vmatpush1.msra.mxu0 0.0
  %108 = vmatprep.subr.mxu0 0.0
  %109 = vmatpush1.msra.mxu0 0.0
  %110 = vmatprep.subr.mxu0 0.0
  %111 = vmatpush1.msra.mxu0 0.0
  %112 = vmatprep.subr.mxu0 0.0
  %113 = vmatpush1.msra.mxu0 0.0
  %114 = vmatprep.subr.mxu0 0.0
  %115 = vmatpush1.msra.mxu0 0.0
  %116 = vmatprep.subr.mxu0 0.0
  %117 = vmatpush1.msra.mxu0 0.0
  %118 = vmatprep.subr.mxu0 0.0
  %119 = vmatpush1.msra.mxu0 0.0
  %120 = vmatprep.mubr.f32.mxu0 0.0
  %121 = vmatmul.mubr.f32.gmra.mrb[0].mxu0 %v54
  %v122 = vpop.f32.mrb[0].mxu0
  %v123 = vadd.f32 %v50, %v122
  %v124 = vpop.f32.mrb[0].mxu0
  %125 = vdwg.mxu0
  %v126 = vmax.f32 %v123, 0.0
  %v127 = vld [vmem:[%s4] sm:$0xff]
  %v128 = vld [vmem:[%s4 + $0x8] sm:$0xff]
  %v129 = vld [vmem:[%s4 + $0x10] sm:$0xff]
  %v130 = vld [vmem:[%s4 + $0x18] sm:$0xff]
  %v131 = vld [vmem:[%s4 + $0x20] sm:$0xff]
  %v132 = vld [vmem:[%s4 + $0x28] sm:$0xff]
  %v133 = vld [vmem:[%s4 + $0x30] sm:$0xff]
  %v134 = vld [vmem:[%s4 + $0x38] sm:$0xff]
  %v135 = vld [vmem:[%s5] sm:$0x1]
  %v137 = vlaneseq
  %v138 = vshrl.u32 %v137, 7
  %v139 = vsub.s32 0, %v138
  %v140 = vrot.slane %v135, %v139
  %v143 = vsel %vm52, %v126, 0
  %145 = vmatprep.subr.mxu0 0.0
  %146 = vmatpush1.msra.mxu0 %v127
  %147 = vmatprep.subr.mxu0 0.0
  %148 = vmatpush1.msra.mxu0 %v128
  %149 = vmatprep.subr.mxu0 0.0
  %150 = vmatpush1.msra.mxu0 %v129
  %151 = vmatprep.subr.mxu0 0.0
  %152 = vmatpush1.msra.mxu0 %v130
  %153 = vmatprep.subr.mxu0 0.0
  %154 = vmatpush1.msra.mxu0 %v131
  %155 = vmatprep.subr.mxu0 0.0
  %156 = vmatpush1.msra.mxu0 %v132
  %157 = vmatprep.subr.mxu0 0.0
  %158 = vmatpush1.msra.mxu0 %v133
  %159 = vmatprep.subr.mxu0 0.0
  %160 = vmatpush1.msra.mxu0 %v134
  %161 = vmatprep.subr.mxu0 0.0
  %162 = vmatpush1.msra.mxu0 0.0
  %163 = vmatprep.subr.mxu0 0.0
  %164 = vmatpush1.msra.mxu0 0.0
  %165 = vmatprep.subr.mxu0 0.0
  %166 = vmatpush1.msra.mxu0 0.0
  %167 = vmatprep.subr.mxu0 0.0
  %168 = vmatpush1.msra.mxu0 0.0
  %169 = vmatprep.subr.mxu0 0.0
  %170 = vmatpush1.msra.mxu0 0.0
  %171 = vmatprep.subr.mxu0 0.0
  %172 = vmatpush1.msra.mxu0 0.0
  %173 = vmatprep.subr.mxu0 0.0
  %174 = vmatpush1.msra.mxu0 0.0
  %175 = vmatprep.subr.mxu0 0.0
  %176 = vmatpush1.msra.mxu0 0.0
  %177 = vmatprep.subr.mxu0 0.0
  %178 = vmatpush1.msra.mxu0 0.0
  %179 = vmatprep.subr.mxu0 0.0
  %180 = vmatpush1.msra.mxu0 0.0
  %181 = vmatprep.subr.mxu0 0.0
  %182 = vmatpush1.msra.mxu0 0.0
  %183 = vmatprep.subr.mxu0 0.0
  %184 = vmatpush1.msra.mxu0 0.0
  %185 = vmatprep.subr.mxu0 0.0
  %186 = vmatpush1.msra.mxu0 0.0
  %187 = vmatprep.subr.mxu0 0.0
  %188 = vmatpush1.msra.mxu0 0.0
  %189 = vmatprep.subr.mxu0 0.0
  %190 = vmatpush1.msra.mxu0 0.0
  %191 = vmatprep.subr.mxu0 0.0
  %192 = vmatpush1.msra.mxu0 0.0
  %193 = vmatprep.subr.mxu0 0.0
  %194 = vmatpush1.msra.mxu0 0.0
  %195 = vmatprep.subr.mxu0 0.0
  %196 = vmatpush1.msra.mxu0 0.0
  %197 = vmatprep.subr.mxu0 0.0
  %198 = vmatpush1.msra.mxu0 0.0
  %199 = vmatprep.subr.mxu0 0.0
  %200 = vmatpush1.msra.mxu0 0.0
  %201 = vmatprep.subr.mxu0 0.0
  %202 = vmatpush1.msra.mxu0 0.0
  %203 = vmatprep.subr.mxu0 0.0
  %204 = vmatpush1.msra.mxu0 0.0
  %205 = vmatprep.subr.mxu0 0.0
  %206 = vmatpush1.msra.mxu0 0.0
  %207 = vmatprep.subr.mxu0 0.0
  %208 = vmatpush1.msra.mxu0 0.0
  %209 = vmatprep.mubr.f32.mxu0 0.0
  %210 = vmatmul.mubr.f32.gmra.mrb[0].mxu0 %v143
  %v211 = vpop.f32.mrb[0].mxu0
  %v212 = vadd.f32 %v140, %v211
  %v213 = vpop.f32.mrb[0].mxu0
  %214 = vdwg.mxu0
  %v215 = vadd.f32 %v212, 1e-09
  %v216 = vand.u32 2147483647, %v215
  %v217 = vsub.f32 0.0, %v216
  %v218 = vmul.f32 %v217, 1.442695
  %v219 = vpow.pop %v218
  %v220 = vmin.f32 %v215, 0.0
  %v221 = vadd.f32 %v219, 1.0
  %v222 = vlog2.pop %v221
  %v223 = vmul.f32 %v222, 0.6931472
  %v224 = vmul.f32 -0.5, %v219
  %v225 = vadd.f32 %v224, 1.0
  %v226 = vmul.f32 %v225, %v219
  %v227 = vand.u32 2147483647, %v219
  %vm228 = vcmp.lt.f32.partialorder %v227, 0.0004427343
  %v229 = vsel %vm228, %v226, %v223
  %v230 = vsub.f32 %v220, %v229
  %vm231 = vcmp.ge.f32.partialorder %v215, 0.0
  %v232 = vsel %vm231, 1.0, %v219
  %v233 = vadd.f32 %v219, 1.0
  %v234 = vrcp.pop %v233
  %v235 = vmul.f32 %v232, %v234
  %237 = vrot.lane.b32.xlu0 %v24, 16
  %v238 = vpop.permute.xlu0 %237
  %vm240 = vcmask 130048
  %v241 = vsel %vm240, %v24, %v238
  %v242 = vadd.f32 %v235, 1.0
  %v243 = vlog2.pop %v242
  %v244 = vmul.f32 %v243, 0.6931472
  %v245 = vmul.f32 -0.5, %v235
  %v246 = vadd.f32 %v245, 1.0
  %v247 = vmul.f32 %v246, %v235
  %v248 = vand.u32 2147483647, %v235
  %vm249 = vcmp.lt.f32.partialorder %v248, 0.0004427343
  %v250 = vsel %vm249, %v247, %v244
  %v251 = vmul.f32 %v230, %v241
  %v252 = vsub.f32 %v250, %v251
  %v253 = vsel %vm240, %v252, 0.0
  %254 = vadd.xlane.f32.xlu0 %v253
  %v255 = vpop.xlane.xlu0 %254
  %257 = vrot.lane.b32.xlu0 %v252, 112
  %v258 = vpop.permute.xlu0 %257
  %v260 = vsel %vm240, %v258, 0.0
  %261 = vadd.xlane.f32.xlu0 %v260
  %v262 = vpop.xlane.xlu0 %261
  %vm263 = vcmp.gt.f32.partialorder %v215, 0.0
  %v264 = vsel %vm263, 1.0, 0.0
  %vm265 = vcmp.eq.f32.partialorder %v264, %v241
  %v266 = vsel %vm265, 1, 0
  %v267 = vcvt.s32.f32 %v266
  %v268 = vsel %vm240, %v267, 0.0
  %269 = vadd.xlane.f32.xlu0 %v268
  %v270 = vpop.xlane.xlu0 %269
  %272 = vrot.lane.b32.xlu0 %v267, 112
  %v273 = vpop.permute.xlu0 %272
  %v275 = vsel %vm240, %v273, 0.0
  %276 = vadd.xlane.f32.xlu0 %v275
  %v277 = vpop.xlane.xlu0 %276
  %v278 = vsel %vm35, %v230, %v255
  %vm279 = vcmask 269312
  %v280 = vsel %vm279, %v278, %v262
  %vm281 = vcmask 277504
  %v282 = vsel %vm281, %v280, %v270
  %vm283 = vcmask 285696
  %v284 = vsel %vm283, %v282, %v277
  %vm285 = vcmask 293888
  %v286 = vsel %vm285, %v284, 0.0
  %287 = vst [vmem:[%s6] sm:$0xff] %v286
  // Predicated region
  $region26: #{decoder_b_forward.1} parent=0 // pred_check
    _
  $region27: #{decoder_b_forward.1} parent=0 // pred_check_branch
    %289 = sbr.rel (0) target = $region29
  $region28: #{decoder_b_forward.1} parent=0 // pred_region
    _
  $region29: #{decoder_b_forward.1} parent=0 // pred_fallthru
    _
  // Predicated region
  $region30: #{decoder_b_forward.1} parent=0 // pred_check
    _
  $region31: #{decoder_b_forward.1} parent=0 // pred_check_branch
    %291 = sbr.rel (0) target = $region33
  $region32: #{decoder_b_forward.1} parent=0 // pred_region
    _
  $region33: #{decoder_b_forward.1} parent=0 // pred_fallthru
    _

</llo_original>
